<compile_context>
chip_gen: v7x
topology: tpu7x:2x2x1
jax: 0.10.0
libtpu: 0.0.40
codegen_flags: <defaults>
</compile_context>

<pallas_src>
import jax
import jax.numpy as jnp
from jax import lax
from jax.experimental import pallas as pl
from jax.experimental.pallas import tpu as pltpu

EPS = 1e-5  # BatchNorm1d default eps


# --------------------------------------------------------------------------------------
# Pallas kernels (built per layer; branch count / shapes are static)
# --------------------------------------------------------------------------------------
def _branch_gemm(x, w, b, K, dil, off, T):
    """One folded ConvBatchChomp branch as a single GEMM.

    x : (Cin, Tp)      padded input (Tp >= T + (K-1)*dil + off)
    w : (Cout, K*Cin)  BN-folded weight, columns ordered (tap, cin)
    b : (Cout, 1)      BN-folded bias
    returns (Cout, T) pre-ReLU output
    """
    cols = [x[:, off + k * dil: off + k * dil + T] for k in range(K)]
    xs = jnp.concatenate(cols, axis=0)                        # (K*Cin, T)
    return jnp.dot(w, xs, preferred_element_type=jnp.float32) + b


def _pad_time(y, h):
    """Zero-pad (rows, T) -> (rows, T + 2h) along the lane axis (h may be 0)."""
    if h == 0:
        return y
    z = jnp.zeros((y.shape[0], h), jnp.float32)
    return jnp.concatenate([z, y, z], axis=1)


def make_round0_kernel(meta, T, h_out):
    """All first-round branches + channel concat + ReLU, output pre-padded by h_out."""
    def kernel(x_ref, *rest):
        o_ref = rest[-1]
        wb = rest[:-1]
        x = x_ref[...]
        outs = []
        for j, (K, dil, off) in enumerate(meta):
            outs.append(_branch_gemm(x, wb[2 * j][...], wb[2 * j + 1][...],
                                     K, dil, off, T))
        out0 = jnp.maximum(jnp.concatenate(outs, axis=0), 0.0)   # (Cout_total, T)
        o_ref[...] = _pad_time(out0, h_out).astype(o_ref.dtype)
    return kernel


def make_round1_kernel(meta, T, h_res, h_out, has_down):
    """All second-round branches + concat + residual (+1x1 conv) + final ReLU."""
    def kernel(x0_ref, xres_ref, *rest):
        o_ref = rest[-1]
        if has_down:
            wd_ref, bd_ref = rest[-3], rest[-2]
            wb = rest[:-3]
        else:
            wb = rest[:-1]
        x0 = x0_ref[...]
        outs = []
        for j, (K, dil, off) in enumerate(meta):
            outs.append(_branch_gemm(x0, wb[2 * j][...], wb[2 * j + 1][...],
                                     K, dil, off, T))
        out1 = jnp.maximum(jnp.concatenate(outs, axis=0), 0.0)   # (Cout_total, T)

        x_center = xres_ref[...][:, h_res: h_res + T]            # un-padded layer input
        if has_down:
            res = jnp.dot(wd_ref[...], x_center,
                          preferred_element_type=jnp.float32) + bd_ref[...]
        else:
            res = x_center.astype(jnp.float32)

        y = jnp.maximum(out1 + res, 0.0)
        o_ref[...] = _pad_time(y, h_out).astype(o_ref.dtype)
    return kernel


# --------------------------------------------------------------------------------------
# pallas_call wrappers (grid over batch, batch axis marked parallel)
# --------------------------------------------------------------------------------------
_PARAMS = pltpu.CompilerParams(dimension_semantics=("parallel",))


def round0_call(xp, layer, T):
    B, Cin, Tp = xp.shape
    H = layer["half"]
    Cout = layer["cout"]
    args = [xp]
    in_specs = [pl.BlockSpec((None, Cin, Tp), lambda b: (b, 0, 0))]
    for w, bias in layer["round0"]:
        args += [w, bias]
        in_specs += [pl.BlockSpec(w.shape, lambda b: (0, 0)),
                     pl.BlockSpec(bias.shape, lambda b: (0, 0))]
    Tp_out = T + 2 * H  # pre-padded for round 1 (same dilation / kernel sizes)
    return pl.pallas_call(
        make_round0_kernel(layer["meta"], T, H),
        out_shape=jax.ShapeDtypeStruct((B, Cout, Tp_out), jnp.float32),
        grid=(B,),
        in_specs=in_specs,
        out_specs=pl.BlockSpec((None, Cout, Tp_out), lambda b: (b, 0, 0)),
        compiler_params=_PARAMS,
    )(*args)


def round1_call(out0_pad, xp, layer, T, h_next):
    B, C0, Tp0 = out0_pad.shape
    _, Cin, Tp_in = xp.shape
    H = layer["half"]
    Cout = layer["cout"]
    has_down = layer["down"] is not None
    args = [out0_pad, xp]
    in_specs = [pl.BlockSpec((None, C0, Tp0), lambda b: (b, 0, 0)),
                pl.BlockSpec((None, Cin, Tp_in), lambda b: (b, 0, 0))]
    for w, bias in layer["round1"]:
        args += [w, bias]
        in_specs += [pl.BlockSpec(w.shape, lambda b: (0, 0)),
                     pl.BlockSpec(bias.shape, lambda b: (0, 0))]
    if has_down:
        wd, bd = layer["down"]
        args += [wd, bd]
        in_specs += [pl.BlockSpec(wd.shape, lambda b: (0, 0)),
                     pl.BlockSpec(bd.shape, lambda b: (0, 0))]
    Tp_out = T + 2 * h_next  # pre-padded for the next layer's round 0
    return pl.pallas_call(
        make_round1_kernel(layer["meta"], T, H, h_next, has_down),
        out_shape=jax.ShapeDtypeStruct((B, Cout, Tp_out), jnp.float32),
        grid=(B,),
        in_specs=in_specs,
        out_specs=pl.BlockSpec((None, Cout, Tp_out), lambda b: (b, 0, 0)),
        compiler_params=_PARAMS,
    )(*args)


def mbtcn_forward(x, folded_layers):
    """x: (B, Cin, T) -> (B, num_channels[-1], T), eval-mode forward."""
    B, _, T = x.shape
    H0 = folded_layers[0]["half"]
    xp = jnp.pad(x, ((0, 0), (0, 0), (H0, H0)))  # the only host-side pad
    for i, layer in enumerate(folded_layers):
        h_next = folded_layers[i + 1]["half"] if i + 1 < len(folded_layers) else 0
        out0_pad = round0_call(xp, layer, T)          # dropout0: identity (eval)
        xp = round1_call(out0_pad, xp, layer, T, h_next)  # dropout1: identity (eval)
    return xp


# --------------------------------------------------------------------------------------
# Parameter init (PyTorch layouts) + host-side BN folding
# --------------------------------------------------------------------------------------
def _init_cbcr(key, cin, cout, k):
    k1, k2, k3, k4, k5, k6 = jax.random.split(key, 6)
    return dict(
        w=0.3 * jax.random.normal(k1, (cout, cin, k), jnp.float32),   # Conv1d weight
        b=0.1 * jax.random.normal(k2, (cout,), jnp.float32),          # Conv1d bias
        gamma=1.0 + 0.1 * jax.random.normal(k3, (cout,), jnp.float32),
        beta=0.1 * jax.random.normal(k4, (cout,), jnp.float32),
        mean=0.1 * jax.random.normal(k5, (cout,), jnp.float32),
        var=1.0 + 0.1 * jnp.abs(jax.random.normal(k6, (cout,), jnp.float32)),
    )


def init_mbtcn(key, num_inputs, num_channels, kernel_sizes):
    num_kernels = len(kernel_sizes)
    layers = []
    for i, out_ch in enumerate(num_channels):
        key, *ks = jax.random.split(key, 2 * num_kernels + 2)
        in_ch = num_inputs if i == 0 else num_channels[i - 1]
        assert out_ch % num_kernels == 0
        branch_out = out_ch // num_kernels
        cbcr0 = [_init_cbcr(ks[j], in_ch, branch_out, kernel_sizes[j])
                 for j in range(num_kernels)]
        cbcr1 = [_init_cbcr(ks[num_kernels + j], out_ch, branch_out, kernel_sizes[j])
                 for j in range(num_kernels)]
        if in_ch // num_kernels != out_ch:  # same condition as the PyTorch module
            kd1, kd2 = jax.random.split(ks[-1])
            down = (0.3 * jax.random.normal(kd1, (out_ch, in_ch), jnp.float32),
                    0.1 * jax.random.normal(kd2, (out_ch,), jnp.float32))
        else:
            down = None
        layers.append(dict(cbcr0=cbcr0, cbcr1=cbcr1, down=down, dilation=2 ** i))
    return layers


def _fold_cbcr(p):
    """Fold BatchNorm running stats + conv bias into the conv weight (eval mode)."""
    cout, cin, K = p["w"].shape
    scale = p["gamma"] * lax.rsqrt(p["var"] + EPS)                     # (Cout,)
    w = p["w"] * scale[:, None, None]                                  # (Cout, Cin, K)
    w = jnp.transpose(w, (0, 2, 1)).reshape(cout, K * cin)             # cols = (tap, cin)
    b = ((p["b"] - p["mean"]) * scale + p["beta"]).reshape(cout, 1)
    return jnp.asarray(w, jnp.float32), jnp.asarray(b, jnp.float32)


def fold_layers(raw_layers, kernel_sizes):
    folded = []
    for L in raw_layers:
        dil = L["dilation"]
        halves = [(k - 1) * dil // 2 for k in kernel_sizes]  # symmetric chomp halves
        H = max(halves)
        meta = tuple((k, dil, H - h) for k, h in zip(kernel_sizes, halves))
        r0 = [_fold_cbcr(p) for p in L["cbcr0"]]
        r1 = [_fold_cbcr(p) for p in L["cbcr1"]]
        down = None
        if L["down"] is not None:
            wd, bd = L["down"]
            down = (jnp.asarray(wd, jnp.float32),
                    jnp.asarray(bd, jnp.float32).reshape(-1, 1))
        cout = sum(p["w"].shape[0] for p in L["cbcr0"])
        folded.append(dict(half=H, meta=meta, round0=r0, round1=r1,
                           down=down, cout=cout))
    return folded


# --------------------------------------------------------------------------------------
# Pure-JAX reference (unfolded, mirrors the PyTorch module in eval mode)
# --------------------------------------------------------------------------------------
def _ref_cbcr(x, p, dilation):
    w = p["w"]                                     # (Cout, Cin, K)
    K = w.shape[-1]
    pad = (K - 1) * dilation
    y = lax.conv_general_dilated(x, w, window_strides=(1,), padding=[(pad, pad)],
                                 rhs_dilation=(dilation,),
                                 dimension_numbers=("NCH", "OIH", "NCH"))
    y = y + p["b"][None, :, None]
    y = (y - p["mean"][None, :, None]) \
        * (p["gamma"] * lax.rsqrt(p["var"] + EPS))[None, :, None] \
        + p["beta"][None, :, None]
    half = pad // 2
    y = y[:, :, half:y.shape[-1] - half]           # symmetric chomp
    return jnp.maximum(y, 0.0)


def _ref_forward(x, raw_layers):
    for L in raw_layers:
        d = L["dilation"]
        out0 = jnp.concatenate([_ref_cbcr(x, p, d) for p in L["cbcr0"]], axis=1)
        out1 = jnp.concatenate([_ref_cbcr(out0, p, d) for p in L["cbcr1"]], axis=1)
        if L["down"] is None:
            res = x
        else:
            wd, bd = L["down"]
            res = jnp.einsum("oc,bct->bot", wd, x) + bd[None, :, None]
        x = jnp.maximum(out1 + res, 0.0)
    return x


# --------------------------------------------------------------------------------------
if __name__ == "__main__":
    key = jax.random.PRNGKey(0)
    kx, kp = jax.random.split(key)

    # small shapes consistent with the module's (B, C, T) forward
    B, C_in, T = 2, 8, 16
    num_channels = [8, 16]          # two TCN levels (dilations 1, 2)
    kernel_sizes = [3, 5]           # tcn_options['kernel_size']

    x = jax.random.normal(kx, (B, C_in, T), jnp.float32)
    raw_layers = init_mbtcn(kp, C_in, num_channels, kernel_sizes)
    folded = fold_layers(raw_layers, kernel_sizes)

    out = jax.block_until_ready(mbtcn_forward(x, folded))
    assert out.shape == (B, num_channels[-1], T), out.shape

    ref = jax.block_until_ready(_ref_forward(x, raw_layers))
    max_err = float(jnp.max(jnp.abs(out - ref)))
    tol = 1e-2 + 1e-3 * float(jnp.max(jnp.abs(ref)))
    if max_err > tol:
        raise AssertionError(f"Pallas output mismatch vs reference: max_err={max_err}")

    print("KERNEL_OK")
</pallas_src>

<mosaic_0001>
module attributes {stable_mosaic.version = 11 : i64} {
  func.func @kernel(%arg0: i32, %arg1: memref<1x8x20xf32, #tpu.memory_space<vmem>>, %arg2: memref<4x24xf32, #tpu.memory_space<vmem>>, %arg3: memref<4x1xf32, #tpu.memory_space<vmem>>, %arg4: memref<4x40xf32, #tpu.memory_space<vmem>>, %arg5: memref<4x1xf32, #tpu.memory_space<vmem>>, %arg6: memref<1x8x20xf32, #tpu.memory_space<vmem>>) attributes {dimension_semantics = [#tpu.dimension_semantics<parallel>], iteration_bounds = array<i64: 2>, scalar_prefetch = 0 : i64, scratch_operands = 0 : i64, tpu.core_type = #tpu.core_type<tc>, window_params = [{transform_indices = @transform_0, window_bounds = array<i64: 1, 8, 20>}, {pipeline_mode = #tpu.pipeline_mode<synchronous>, transform_indices = @transform_1, window_bounds = array<i64: 4, 24>}, {pipeline_mode = #tpu.pipeline_mode<synchronous>, transform_indices = @transform_2, window_bounds = array<i64: 4, 1>}, {pipeline_mode = #tpu.pipeline_mode<synchronous>, transform_indices = @transform_3, window_bounds = array<i64: 4, 40>}, {pipeline_mode = #tpu.pipeline_mode<synchronous>, transform_indices = @transform_4, window_bounds = array<i64: 4, 1>}, {transform_indices = @transform_5, window_bounds = array<i64: 1, 8, 20>}]} {
    %c0 = arith.constant 0 : index
    %c0_0 = arith.constant 0 : index
    %c0_1 = arith.constant 0 : index
    %0 = vector.load %arg1[%c0, %c0_0, %c0_1] : memref<1x8x20xf32, #tpu.memory_space<vmem>>, vector<1x8x20xf32>
    %1 = vector.shape_cast %0 : vector<1x8x20xf32> to vector<8x20xf32>
    %c0_2 = arith.constant 0 : index
    %c0_3 = arith.constant 0 : index
    %2 = vector.load %arg2[%c0_2, %c0_3] : memref<4x24xf32, #tpu.memory_space<vmem>>, vector<4x24xf32>
    %c0_4 = arith.constant 0 : index
    %c0_5 = arith.constant 0 : index
    %3 = vector.load %arg3[%c0_4, %c0_5] : memref<4x1xf32, #tpu.memory_space<vmem>>, vector<4x1xf32>
    %4 = vector.extract_strided_slice %1 {offsets = [0, 1], sizes = [8, 16], strides = [1, 1]} : vector<8x20xf32> to vector<8x16xf32>
    %5 = vector.extract_strided_slice %1 {offsets = [0, 2], sizes = [8, 16], strides = [1, 1]} : vector<8x20xf32> to vector<8x16xf32>
    %6 = vector.extract_strided_slice %1 {offsets = [0, 3], sizes = [8, 16], strides = [1, 1]} : vector<8x20xf32> to vector<8x16xf32>
    %7 = tpu.concatenate %4, %5, %6 in 0 : vector<8x16xf32>, vector<8x16xf32>, vector<8x16xf32> -> vector<24x16xf32>
    %cst = arith.constant dense<0.000000e+00> : vector<4x16xf32>
    %8 = tpu.matmul %2, %7, %cst {dimension_numbers = #tpu.dot_dimension_numbers<[1], [0], [0], [1], [0, 0, 1, 1], [], []>} : vector<4x24xf32>, vector<24x16xf32>, vector<4x16xf32> -> vector<4x16xf32>
    %9 = vector.broadcast %3 : vector<4x1xf32> to vector<4x16xf32>
    %10 = arith.addf %8, %9 : vector<4x16xf32>
    %c0_6 = arith.constant 0 : index
    %c0_7 = arith.constant 0 : index
    %11 = vector.load %arg4[%c0_6, %c0_7] : memref<4x40xf32, #tpu.memory_space<vmem>>, vector<4x40xf32>
    %c0_8 = arith.constant 0 : index
    %c0_9 = arith.constant 0 : index
    %12 = vector.load %arg5[%c0_8, %c0_9] : memref<4x1xf32, #tpu.memory_space<vmem>>, vector<4x1xf32>
    %13 = vector.extract_strided_slice %1 {offsets = [0, 0], sizes = [8, 16], strides = [1, 1]} : vector<8x20xf32> to vector<8x16xf32>
    %14 = vector.extract_strided_slice %1 {offsets = [0, 1], sizes = [8, 16], strides = [1, 1]} : vector<8x20xf32> to vector<8x16xf32>
    %15 = vector.extract_strided_slice %1 {offsets = [0, 2], sizes = [8, 16], strides = [1, 1]} : vector<8x20xf32> to vector<8x16xf32>
    %16 = vector.extract_strided_slice %1 {offsets = [0, 3], sizes = [8, 16], strides = [1, 1]} : vector<8x20xf32> to vector<8x16xf32>
    %17 = vector.extract_strided_slice %1 {offsets = [0, 4], sizes = [8, 16], strides = [1, 1]} : vector<8x20xf32> to vector<8x16xf32>
    %18 = tpu.concatenate %13, %14, %15, %16, %17 in 0 : vector<8x16xf32>, vector<8x16xf32>, vector<8x16xf32>, vector<8x16xf32>, vector<8x16xf32> -> vector<40x16xf32>
    %cst_10 = arith.constant dense<0.000000e+00> : vector<4x16xf32>
    %19 = tpu.matmul %11, %18, %cst_10 {dimension_numbers = #tpu.dot_dimension_numbers<[1], [0], [0], [1], [0, 0, 1, 1], [], []>} : vector<4x40xf32>, vector<40x16xf32>, vector<4x16xf32> -> vector<4x16xf32>
    %20 = vector.broadcast %12 : vector<4x1xf32> to vector<4x16xf32>
    %21 = arith.addf %19, %20 : vector<4x16xf32>
    %22 = tpu.concatenate %10, %21 in 0 : vector<4x16xf32>, vector<4x16xf32> -> vector<8x16xf32>
    %cst_11 = arith.constant 0.000000e+00 : f32
    %23 = vector.broadcast %cst_11 : f32 to vector<8x16xf32>
    %24 = arith.maximumf %22, %23 : vector<8x16xf32>
    %cst_12 = arith.constant 0.000000e+00 : f32
    %25 = vector.broadcast %cst_12 : f32 to vector<8x2xf32>
    %26 = tpu.concatenate %25, %24, %25 in 1 : vector<8x2xf32>, vector<8x16xf32>, vector<8x2xf32> -> vector<8x20xf32>
    %c0_13 = arith.constant 0 : index
    %c0_14 = arith.constant 0 : index
    %c0_15 = arith.constant 0 : index
    %27 = vector.load %arg6[%c0_13, %c0_14, %c0_15] : memref<1x8x20xf32, #tpu.memory_space<vmem>>, vector<1x8x20xf32>
    %28 = vector.shape_cast %27 : vector<1x8x20xf32> to vector<8x20xf32>
    %29 = vector.shape_cast %26 : vector<8x20xf32> to vector<1x8x20xf32>
    tpu.vector_store %arg6[%c0_13, %c0_14, %c0_15], %29 {strides = array<i32>} : memref<1x8x20xf32, #tpu.memory_space<vmem>>, vector<1x8x20xf32>,
    return
  }
  func.func @transform_0(%arg0: i32) -> (i32, i32, i32) {
    %c0_i32 = arith.constant 0 : i32
    %c0_i32_0 = arith.constant 0 : i32
    %c0_i32_1 = arith.constant 0 : i32
    return %arg0, %c0_i32, %c0_i32_0 : i32, i32, i32
  }
  func.func @transform_1(%arg0: i32) -> (i32, i32) {
    %c0_i32 = arith.constant 0 : i32
    %c0_i32_0 = arith.constant 0 : i32
    %c0_i32_1 = arith.constant 0 : i32
    return %c0_i32, %c0_i32_0 : i32, i32
  }
  func.func @transform_2(%arg0: i32) -> (i32, i32) {
    %c0_i32 = arith.constant 0 : i32
    %c0_i32_0 = arith.constant 0 : i32
    %c0_i32_1 = arith.constant 0 : i32
    return %c0_i32, %c0_i32_0 : i32, i32
  }
  func.func @transform_3(%arg0: i32) -> (i32, i32) {
    %c0_i32 = arith.constant 0 : i32
    %c0_i32_0 = arith.constant 0 : i32
    %c0_i32_1 = arith.constant 0 : i32
    return %c0_i32, %c0_i32_0 : i32, i32
  }
  func.func @transform_4(%arg0: i32) -> (i32, i32) {
    %c0_i32 = arith.constant 0 : i32
    %c0_i32_0 = arith.constant 0 : i32
    %c0_i32_1 = arith.constant 0 : i32
    return %c0_i32, %c0_i32_0 : i32, i32
  }
  func.func @transform_5(%arg0: i32) -> (i32, i32, i32) {
    %c0_i32 = arith.constant 0 : i32
    %c0_i32_0 = arith.constant 0 : i32
    %c0_i32_1 = arith.constant 0 : i32
    return %arg0, %c0_i32, %c0_i32_0 : i32, i32, i32
  }
}

</mosaic_0001>

<llo_original>
// kernel: tpu_custom_call.1
$region0: #{tpu_custom_call.1}
  #allocation0 [shape = 'u32[]', space=smem, size = 0x4, offset = 0x4, fixed_abs, tag = 'smem constant byte address 0x4 - core index']
  #allocation1 [shape = 'u32[144,128]{1,0:T(1,128)}', space=vmem, size = 0x12000, scoped, tag = 'internal scratch']
  %s0 = inlined_call_operand.hbm [shape: f32[2,8,20], index: 0, kind: input, shape index: {}]
  %s1 = inlined_call_operand.vmem [shape: f32[4,24], index: 1, kind: input, shape index: {}]
  %s2 = inlined_call_operand.vmem [shape: f32[4,1], index: 2, kind: input, shape index: {}]
  %s3 = inlined_call_operand.vmem [shape: f32[4,40], index: 3, kind: input, shape index: {}]
  %s4 = inlined_call_operand.vmem [shape: f32[4,1], index: 4, kind: input, shape index: {}]
  %s5 = inlined_call_operand.hbm [shape: f32[2,8,20], index: 5, kind: output, shape index: {}]
  %s6 = sld [smem:[#allocation0]]
  $region57: #{tpu_custom_call.1} parent=0
    _
  %s8 = ssub.s32 1, %s6
  %s9 = scalar_select 0, %s8, %s6
  $region1: #{tpu_custom_call.1} parent=0
    #allocation2 [shape = 'u8[8192]{0}', space=vmem, size = 0x2000, scoped, tag = 'input window, operand 0']
    #allocation3 [shape = 's32[2]{0}', space=sflag, size = 0x8, scoped, tag = 'scoped memory for tpu_custom_call.1']
    #allocation4 [shape = 's32[2]{0}', space=sflag, size = 0x8, scoped, tag = 'scoped memory for tpu_custom_call.1']
    #allocation5 [shape = 'u8[8192]{0}', space=vmem, size = 0x2000, scoped, tag = 'output window, operand 0']
    %10 = vsyncpa [#allocation3], 0
    %s11 = scalar_lea.sflag [#allocation3], 1
    %12 = vsyncpa %s11, 0
    %13 = vsyncpa [#allocation4], 0
    %s14 = scalar_lea.sflag [#allocation4], 1
    %15 = vsyncpa %s14, 0
    loop: start=0, step=1, limit=4
    $region2: #{tpu_custom_call.1} parent=1 // loop_pre_header
      _
    $region3: #{tpu_custom_call.1} parent=1 // loop_header
      %s17 = sphi 0, %s21
      %p18 = scmp.ge.s32.totalorder %s17, 4
      %s27 = sphi 0, %s29
      %s30 = sphi 0, %s27
      %s31 = sphi 0, %s30
      %s47 = sphi 0, %s31
      %s51 = sphi 0, %s51
      %s53 = sphi 0, %s51
      %s54 = sphi 0, %s53
      %s68 = sphi 0, %s54
      %s72 = sphi 0, %s72
      %s74 = sphi 0, %s72
      %s75 = sphi 0, %s74
      %s89 = sphi 0, %s75
      %s93 = sphi 0, %s93
      %s95 = sphi 0, %s93
      %s96 = sphi 0, %s95
      %s110 = sphi 0, %s96
      %s114 = sphi 0, %s114
      %s116 = sphi 0, %s114
      %s117 = sphi 0, %s116
      %s131 = sphi 0, %s117
      %s137 = sphi 0, %s139
      %s140 = sphi 0, %s137
      %s141 = sphi 0, %s140
      %s157 = sphi 0, %s141
    $region4: #{tpu_custom_call.1} parent=1 // loop_header_branch
      %20 = sbr.rel (%p18) target = $region8
    $region5: #{tpu_custom_call.1} parent=1 // loop_body
      %s22 = ssub.s32 %s17, 1
      %s23 = ssub.s32 %s17, 2
      %s24 = sadd.s32 %s17, 1
      %s25 = ssub.s32 %s17, %s24
      %p26 = scmp.eq.s32.totalorder %s25, 0
      %s28 = sadd.s32 %s27, 1
      %s29 = scalar_select %p26, %s27, %s28
      %p32 = pneg %p26
      %p33 = scmp.eq.s32.totalorder %s17, 1
      %p34 = por %p32, %p33
      %p35 = scmp.ne.s32.totalorder %s27, %s30
      %p36 = scmp.eq.s32.totalorder %s17, 0
      %p37 = por %p35, %p36
      %p38 = scmp.ne.s32.totalorder %s27, %s30
      %p39 = scmp.eq.s32.totalorder %s22, 1
      %p40 = por %p38, %p39
      %p41 = scmp.ne.s32.totalorder %s30, %s31
      %p42 = scmp.eq.s32.totalorder %s22, 0
      %p43 = por %p41, %p42
      %p44 = scmp.ne.s32.totalorder %s30, %s31
      %p45 = scmp.eq.s32.totalorder %s23, 1
      %p46 = por %p44, %p45
      %p48 = scmp.ne.s32.totalorder %s31, %s47
      %p49 = scmp.eq.s32.totalorder %s23, 0
      %p50 = por %p48, %p49
      %s52 = sadd.s32 %s51, 1
      %p55 = scmp.eq.s32.totalorder %s17, 1
      %p56 = scmp.ne.s32.totalorder %s51, %s53
      %p57 = scmp.eq.s32.totalorder %s17, 0
      %p58 = por %p56, %p57
      %p59 = scmp.ne.s32.totalorder %s51, %s53
      %p60 = scmp.eq.s32.totalorder %s22, 1
      %p61 = por %p59, %p60
      %p62 = scmp.ne.s32.totalorder %s53, %s54
      %p63 = scmp.eq.s32.totalorder %s22, 0
      %p64 = por %p62, %p63
      %p65 = scmp.ne.s32.totalorder %s53, %s54
      %p66 = scmp.eq.s32.totalorder %s23, 1
      %p67 = por %p65, %p66
      %p69 = scmp.ne.s32.totalorder %s54, %s68
      %p70 = scmp.eq.s32.totalorder %s23, 0
      %p71 = por %p69, %p70
      %s73 = sadd.s32 %s72, 1
      %p76 = scmp.eq.s32.totalorder %s17, 1
      %p77 = scmp.ne.s32.totalorder %s72, %s74
      %p78 = scmp.eq.s32.totalorder %s17, 0
      %p79 = por %p77, %p78
      %p80 = scmp.ne.s32.totalorder %s72, %s74
      %p81 = scmp.eq.s32.totalorder %s22, 1
      %p82 = por %p80, %p81
      %p83 = scmp.ne.s32.totalorder %s74, %s75
      %p84 = scmp.eq.s32.totalorder %s22, 0
      %p85 = por %p83, %p84
      %p86 = scmp.ne.s32.totalorder %s74, %s75
      %p87 = scmp.eq.s32.totalorder %s23, 1
      %p88 = por %p86, %p87
      %p90 = scmp.ne.s32.totalorder %s75, %s89
      %p91 = scmp.eq.s32.totalorder %s23, 0
      %p92 = por %p90, %p91
      %s94 = sadd.s32 %s93, 1
      %p97 = scmp.eq.s32.totalorder %s17, 1
      %p98 = scmp.ne.s32.totalorder %s93, %s95
      %p99 = scmp.eq.s32.totalorder %s17, 0
      %p100 = por %p98, %p99
      %p101 = scmp.ne.s32.totalorder %s93, %s95
      %p102 = scmp.eq.s32.totalorder %s22, 1
      %p103 = por %p101, %p102
      %p104 = scmp.ne.s32.totalorder %s95, %s96
      %p105 = scmp.eq.s32.totalorder %s22, 0
      %p106 = por %p104, %p105
      %p107 = scmp.ne.s32.totalorder %s95, %s96
      %p108 = scmp.eq.s32.totalorder %s23, 1
      %p109 = por %p107, %p108
      %p111 = scmp.ne.s32.totalorder %s96, %s110
      %p112 = scmp.eq.s32.totalorder %s23, 0
      %p113 = por %p111, %p112
      %s115 = sadd.s32 %s114, 1
      %p118 = scmp.eq.s32.totalorder %s17, 1
      %p119 = scmp.ne.s32.totalorder %s114, %s116
      %p120 = scmp.eq.s32.totalorder %s17, 0
      %p121 = por %p119, %p120
      %p122 = scmp.ne.s32.totalorder %s114, %s116
      %p123 = scmp.eq.s32.totalorder %s22, 1
      %p124 = por %p122, %p123
      %p125 = scmp.ne.s32.totalorder %s116, %s117
      %p126 = scmp.eq.s32.totalorder %s22, 0
      %p127 = por %p125, %p126
      %p128 = scmp.ne.s32.totalorder %s116, %s117
      %p129 = scmp.eq.s32.totalorder %s23, 1
      %p130 = por %p128, %p129
      %p132 = scmp.ne.s32.totalorder %s117, %s131
      %p133 = scmp.eq.s32.totalorder %s23, 0
      %p134 = por %p132, %p133
      %s135 = ssub.s32 %s17, %s24
      %p136 = scmp.eq.s32.totalorder %s135, 0
      %s138 = sadd.s32 %s137, 1
      %s139 = scalar_select %p136, %s137, %s138
      %p142 = pneg %p136
      %p143 = scmp.eq.s32.totalorder %s17, 1
      %p144 = por %p142, %p143
      %p145 = scmp.ne.s32.totalorder %s137, %s140
      %p146 = scmp.eq.s32.totalorder %s17, 0
      %p147 = por %p145, %p146
      %p148 = scmp.ne.s32.totalorder %s137, %s140
      %p149 = scmp.eq.s32.totalorder %s22, 1
      %p150 = por %p148, %p149
      %p151 = scmp.ne.s32.totalorder %s140, %s141
      %p152 = scmp.eq.s32.totalorder %s22, 0
      %p153 = por %p151, %p152
      %p154 = scmp.ne.s32.totalorder %s140, %s141
      %p155 = scmp.eq.s32.totalorder %s23, 1
      %p156 = por %p154, %p155
      %p158 = scmp.ne.s32.totalorder %s141, %s157
      %p159 = scmp.eq.s32.totalorder %s23, 0
      %p160 = por %p158, %p159
      %p161 = scmp.le.s32.totalorder 1, %s17
      %p162 = scmp.lt.s32.totalorder %s17, 3
      %p163 = pnand %p161, %p162
      %p164 = pneg %p163
      // Predicated region
      $region9: #{tpu_custom_call.1} parent=5 // pred_check
        _
      $region10: #{tpu_custom_call.1} parent=5 // pred_check_branch
        %166 = sbr.rel (%p163) target = $region12
      $region11: #{tpu_custom_call.1} parent=5 // pred_region
        %s167 = ssub.s32 %s17, 1
        // Predicated region
        $region13: #{tpu_custom_call.1} parent=11 // pred_check
          %p168 = pneg %p64
        $region14: #{tpu_custom_call.1} parent=11 // pred_check_branch
          %170 = sbr.rel (%p168) target = $region16
        $region15: #{tpu_custom_call.1} parent=11 // pred_region
          _
        $region16: #{tpu_custom_call.1} parent=11 // pred_fallthru
          _
        // Predicated region
        $region17: #{tpu_custom_call.1} parent=11 // pred_check
          %p171 = pneg %p85
        $region18: #{tpu_custom_call.1} parent=11 // pred_check_branch
          %173 = sbr.rel (%p171) target = $region20
        $region19: #{tpu_custom_call.1} parent=11 // pred_region
          _
        $region20: #{tpu_custom_call.1} parent=11 // pred_fallthru
          _
        // Predicated region
        $region21: #{tpu_custom_call.1} parent=11 // pred_check
          %p174 = pneg %p106
        $region22: #{tpu_custom_call.1} parent=11 // pred_check_branch
          %176 = sbr.rel (%p174) target = $region24
        $region23: #{tpu_custom_call.1} parent=11 // pred_region
          _
        $region24: #{tpu_custom_call.1} parent=11 // pred_fallthru
          _
        // Predicated region
        $region25: #{tpu_custom_call.1} parent=11 // pred_check
          %p177 = pneg %p127
        $region26: #{tpu_custom_call.1} parent=11 // pred_check_branch
          %179 = sbr.rel (%p177) target = $region28
        $region27: #{tpu_custom_call.1} parent=11 // pred_region
          _
        $region28: #{tpu_custom_call.1} parent=11 // pred_fallthru
          _
      $region12: #{tpu_custom_call.1} parent=5 // pred_fallthru
        _
      %p180 = scmp.lt.s32.totalorder %s17, 2
      // Predicated region
      $region29: #{tpu_custom_call.1} parent=5 // pred_check
        %p181 = pneg %p180
      $region30: #{tpu_custom_call.1} parent=5 // pred_check_branch
        %183 = sbr.rel (%p181) target = $region32
      $region31: #{tpu_custom_call.1} parent=5 // pred_region
        // Predicated region
        $region33: #{tpu_custom_call.1} parent=31 // pred_check
          %p184 = pneg %p37
        $region34: #{tpu_custom_call.1} parent=31 // pred_check_branch
          %186 = sbr.rel (%p184) target = $region36
        $region35: #{tpu_custom_call.1} parent=31 // pred_region
          %s187 = sand.u32 %s27, 1
          %s188 = scalar_lea.sflag [#allocation3], %s187
          %s189 = sand.u32 %s27, 1
          %s190 = smul.addr %s189, 8
          %s191 = scalar_lea.vmem [#allocation2], %s190
          %s193 = ssub.s32 128, 128
          %194 = vsyncadd %s188, %s193
          %s195 = smul.addr %s17, 128
          %s196 = scalar_lea.hbm %s0, %s195
          %s198 = sshll.u32 %s191, 4
          %s199 = int_to_ptr.vmem [resolvable:$true] %s198
          %201 = dma.hbm_to_vmem [thread:$0]  %s196, 128, %s199, %s188
        $region36: #{tpu_custom_call.1} parent=31 // pred_fallthru
          _
      $region32: #{tpu_custom_call.1} parent=5 // pred_fallthru
        _
      %p202 = scmp.le.s32.totalorder 1, %s17
      %p203 = scmp.lt.s32.totalorder %s17, 3
      %p204 = pnand %p202, %p203
      %p205 = pneg %p204
      // Predicated region
      $region37: #{tpu_custom_call.1} parent=5 // pred_check
        _
      $region38: #{tpu_custom_call.1} parent=5 // pred_check_branch
        %207 = sbr.rel (%p204) target = $region40
      $region39: #{tpu_custom_call.1} parent=5 // pred_region
        %s208 = ssub.s32 %s17, 1
        %s209 = sand.u32 %s30, 1
        %s210 = scalar_lea.sflag [#allocation3], %s209
        %s211 = sand.u32 %s30, 1
        %s212 = smul.addr %s211, 8
        %s213 = scalar_lea.vmem [#allocation2], %s212
        // Predicated region
        $region41: #{tpu_custom_call.1} parent=39 // pred_check
          %p214 = pneg %p43
        $region42: #{tpu_custom_call.1} parent=39 // pred_check_branch
          %216 = sbr.rel (%p214) target = $region44
        $region43: #{tpu_custom_call.1} parent=39 // pred_region
          %217 = dma.done %s210, 128
        $region44: #{tpu_custom_call.1} parent=39 // pred_fallthru
          _
        %s218 = sand.u32 %s30, 1
        %s219 = scalar_lea.sflag [#allocation3], %s218
        %s220 = sand.u32 %s30, 1
        %s221 = smul.addr %s220, 8
        %s222 = scalar_lea.vmem [#allocation2], %s221
        %p223 = pneg %p43
        %p224 = pneg %p40
        %p225 = pneg %p64
        %p226 = pneg %p61
        %p227 = pneg %p85
        %p228 = pneg %p82
        %p229 = pneg %p106
        %p230 = pneg %p103
        %p231 = pneg %p127
        %p232 = pneg %p124
        %p233 = pneg %p153
        %p234 = pneg %p150
        %s235 = sand.u32 %s140, 1
        %s236 = scalar_lea.sflag [#allocation4], %s235
        %s237 = sand.u32 %s140, 1
        %s238 = smul.addr %s237, 8
        %s239 = scalar_lea.vmem [#allocation5], %s238
        %v240 = vld [vmem:[%s213] sm:$0xff]
        %v241 = vld [vmem:[%s1] sm:$0xf]
        %v242 = vld [vmem:[%s2] sm:$0xf]
        %244 = vrot.lane.b32.xlu0 %v240, 127
        %v245 = vpop.permute.xlu0 %244
        %246 = vrot.lane.b32.xlu0 %v240, 126
        %v247 = vpop.permute.xlu0 %246
        %249 = vset.pattern.permute.xlu0 0
        %250 = vperm.xlu0 %249, %v242
        %v251 = vpop.permute.xlu0 %250
        %253 = vrot.lane.b32.xlu0 %v245, 127
        %v254 = vpop.permute.xlu0 %253
        %255 = vrot.lane.b32.xlu0 %v247, 127
        %v256 = vpop.permute.xlu0 %255
        %vm260 = vcmask 195584
        %v262 = vsel %vm260, %v241, 0
        %264 = vmatprep.subr.mxu0 0.0
        %265 = vmatpush1.msra.mxu0 %v245
        %266 = vmatprep.subr.mxu0 0.0
        %267 = vmatpush1.msra.mxu0 %v254
        %268 = vmatprep.subr.mxu0 0.0
        %269 = vmatpush1.msra.mxu0 %v256
        %270 = vmatprep.subr.mxu0 0.0
        %271 = vmatpush1.msra.mxu0 0.0
        %272 = vmatprep.subr.mxu0 0.0
        %273 = vmatpush1.msra.mxu0 0.0
        %274 = vmatprep.subr.mxu0 0.0
        %275 = vmatpush1.msra.mxu0 0.0
        %276 = vmatprep.subr.mxu0 0.0
        %277 = vmatpush1.msra.mxu0 0.0
        %278 = vmatprep.subr.mxu0 0.0
        %279 = vmatpush1.msra.mxu0 0.0
        %280 = vmatprep.subr.mxu0 0.0
        %281 = vmatpush1.msra.mxu0 0.0
        %282 = vmatprep.subr.mxu0 0.0
        %283 = vmatpush1.msra.mxu0 0.0
        %284 = vmatprep.subr.mxu0 0.0
        %285 = vmatpush1.msra.mxu0 0.0
        %286 = vmatprep.subr.mxu0 0.0
        %287 = vmatpush1.msra.mxu0 0.0
        %288 = vmatprep.subr.mxu0 0.0
        %289 = vmatpush1.msra.mxu0 0.0
        %290 = vmatprep.subr.mxu0 0.0
        %291 = vmatpush1.msra.mxu0 0.0
        %292 = vmatprep.subr.mxu0 0.0
        %293 = vmatpush1.msra.mxu0 0.0
        %294 = vmatprep.subr.mxu0 0.0
        %295 = vmatpush1.msra.mxu0 0.0
        %296 = vmatprep.subr.mxu0 0.0
        %297 = vmatpush1.msra.mxu0 0.0
        %298 = vmatprep.subr.mxu0 0.0
        %299 = vmatpush1.msra.mxu0 0.0
        %300 = vmatprep.subr.mxu0 0.0
        %301 = vmatpush1.msra.mxu0 0.0
        %302 = vmatprep.subr.mxu0 0.0
        %303 = vmatpush1.msra.mxu0 0.0
        %304 = vmatprep.subr.mxu0 0.0
        %305 = vmatpush1.msra.mxu0 0.0
        %306 = vmatprep.subr.mxu0 0.0
        %307 = vmatpush1.msra.mxu0 0.0
        %308 = vmatprep.subr.mxu0 0.0
        %309 = vmatpush1.msra.mxu0 0.0
        %310 = vmatprep.subr.mxu0 0.0
        %311 = vmatpush1.msra.mxu0 0.0
        %312 = vmatprep.subr.mxu0 0.0
        %313 = vmatpush1.msra.mxu0 0.0
        %314 = vmatprep.subr.mxu0 0.0
        %315 = vmatpush1.msra.mxu0 0.0
        %316 = vmatprep.subr.mxu0 0.0
        %317 = vmatpush1.msra.mxu0 0.0
        %318 = vmatprep.subr.mxu0 0.0
        %319 = vmatpush1.msra.mxu0 0.0
        %320 = vmatprep.subr.mxu0 0.0
        %321 = vmatpush1.msra.mxu0 0.0
        %322 = vmatprep.subr.mxu0 0.0
        %323 = vmatpush1.msra.mxu0 0.0
        %324 = vmatprep.subr.mxu0 0.0
        %325 = vmatpush1.msra.mxu0 0.0
        %326 = vmatprep.subr.mxu0 0.0
        %327 = vmatpush1.msra.mxu0 0.0
        %328 = vmatprep.mubr.f32.mxu0 0.0
        %329 = vmatmul.mubr.f32.gmra.mrb[0].mxu0 %v262
        %v330 = vpop.f32.mrb[0].mxu0
        %v331 = vadd.f32 %v251, %v330
        %v332 = vpop.f32.mrb[0].mxu0
        %333 = vdwg.mxu0
        %v334 = vld [vmem:[%s3] sm:$0xf]
        %v335 = vld [vmem:[%s4] sm:$0xf]
        %337 = vrot.lane.b32.xlu0 %v240, 125
        %v338 = vpop.permute.xlu0 %337
        %340 = vrot.lane.b32.xlu0 %v240, 124
        %v341 = vpop.permute.xlu0 %340
        %344 = vset.pattern.permute.xlu0 0
        %345 = vperm.xlu0 %344, %v335
        %v346 = vpop.permute.xlu0 %345
        %vm348 = vcmask 326656
        %v350 = vsel %vm348, %v334, 0
        %352 = vmatprep.subr.mxu0 0.0
        %353 = vmatpush1.msra.mxu0 %v240
        %354 = vmatprep.subr.mxu0 0.0
        %355 = vmatpush1.msra.mxu0 %v245
        %356 = vmatprep.subr.mxu0 0.0
        %357 = vmatpush1.msra.mxu0 %v247
        %358 = vmatprep.subr.mxu0 0.0
        %359 = vmatpush1.msra.mxu0 %v338
        %360 = vmatprep.subr.mxu0 0.0
        %361 = vmatpush1.msra.mxu0 %v341
        %362 = vmatprep.subr.mxu0 0.0
        %363 = vmatpush1.msra.mxu0 0.0
        %364 = vmatprep.subr.mxu0 0.0
        %365 = vmatpush1.msra.mxu0 0.0
        %366 = vmatprep.subr.mxu0 0.0
        %367 = vmatpush1.msra.mxu0 0.0
        %368 = vmatprep.subr.mxu0 0.0
        %369 = vmatpush1.msra.mxu0 0.0
        %370 = vmatprep.subr.mxu0 0.0
        %371 = vmatpush1.msra.mxu0 0.0
        %372 = vmatprep.subr.mxu0 0.0
        %373 = vmatpush1.msra.mxu0 0.0
        %374 = vmatprep.subr.mxu0 0.0
        %375 = vmatpush1.msra.mxu0 0.0
        %376 = vmatprep.subr.mxu0 0.0
        %377 = vmatpush1.msra.mxu0 0.0
        %378 = vmatprep.subr.mxu0 0.0
        %379 = vmatpush1.msra.mxu0 0.0
        %380 = vmatprep.subr.mxu0 0.0
        %381 = vmatpush1.msra.mxu0 0.0
        %382 = vmatprep.subr.mxu0 0.0
        %383 = vmatpush1.msra.mxu0 0.0
        %384 = vmatprep.subr.mxu0 0.0
        %385 = vmatpush1.msra.mxu0 0.0
        %386 = vmatprep.subr.mxu0 0.0
        %387 = vmatpush1.msra.mxu0 0.0
        %388 = vmatprep.subr.mxu0 0.0
        %389 = vmatpush1.msra.mxu0 0.0
        %390 = vmatprep.subr.mxu0 0.0
        %391 = vmatpush1.msra.mxu0 0.0
        %392 = vmatprep.subr.mxu0 0.0
        %393 = vmatpush1.msra.mxu0 0.0
        %394 = vmatprep.subr.mxu0 0.0
        %395 = vmatpush1.msra.mxu0 0.0
        %396 = vmatprep.subr.mxu0 0.0
        %397 = vmatpush1.msra.mxu0 0.0
        %398 = vmatprep.subr.mxu0 0.0
        %399 = vmatpush1.msra.mxu0 0.0
        %400 = vmatprep.subr.mxu0 0.0
        %401 = vmatpush1.msra.mxu0 0.0
        %402 = vmatprep.subr.mxu0 0.0
        %403 = vmatpush1.msra.mxu0 0.0
        %404 = vmatprep.subr.mxu0 0.0
        %405 = vmatpush1.msra.mxu0 0.0
        %406 = vmatprep.subr.mxu0 0.0
        %407 = vmatpush1.msra.mxu0 0.0
        %408 = vmatprep.subr.mxu0 0.0
        %409 = vmatpush1.msra.mxu0 0.0
        %410 = vmatprep.subr.mxu0 0.0
        %411 = vmatpush1.msra.mxu0 0.0
        %412 = vmatprep.subr.mxu0 0.0
        %413 = vmatpush1.msra.mxu0 0.0
        %414 = vmatprep.subr.mxu0 0.0
        %415 = vmatpush1.msra.mxu0 0.0
        %416 = vmatprep.mubr.f32.mxu0 0.0
        %417 = vmatmul.mubr.f32.gmra.mrb[0].mxu0 %v350
        %v418 = vpop.f32.mrb[0].mxu0
        %v419 = vadd.f32 %v346, %v418
        %v420 = vpop.f32.mrb[0].mxu0
        %421 = vdwg.mxu0
        %v423 = vrot.slane %v419, 4
        %vm425 = vcmask 1043456
        %v426 = vsel %vm425, %v331, %v423
        %v427 = vmax.f32 %v426, 0.0
        %429 = vrot.lane.b32.xlu0 %v427, 2
        %v430 = vpop.permute.xlu0 %429
        %vm432 = vcmask 15360
        %v433 = vsel %vm432, 0.0, %v430
        %vm434 = vcmask 146432
        %v435 = vsel %vm434, %v433, 0.0
        %vm436 = vcmask 162816
        %437 = vst.msk [vmem:[%s239] sm:$0xff] %vm436, %v435
        %s438 = sand.u32 %s140, 1
        %s439 = scalar_lea.sflag [#allocation4], %s438
        %s440 = sand.u32 %s140, 1
        %s441 = smul.addr %s440, 8
        %s442 = scalar_lea.vmem [#allocation5], %s441
        // Predicated region
        $region45: #{tpu_custom_call.1} parent=39 // pred_check
          %p443 = pneg %p150
        $region46: #{tpu_custom_call.1} parent=39 // pred_check_branch
          %445 = sbr.rel (%p443) target = $region48
        $region47: #{tpu_custom_call.1} parent=39 // pred_region
          %s447 = ssub.s32 128, 128
          %448 = vsyncadd %s439, %s447
          %s449 = smul.addr %s22, 128
          %s450 = scalar_lea.hbm %s5, %s449
          %s452 = sshll.u32 %s442, 4
          %s453 = int_to_ptr.vmem [resolvable:$true] %s452
          %455 = dma.vmem_to_hbm [thread:$0]  %s453, 128, %s450, %s439
        $region48: #{tpu_custom_call.1} parent=39 // pred_fallthru
          _
      $region40: #{tpu_custom_call.1} parent=5 // pred_fallthru
        _
      %p456 = scmp.le.s32.totalorder 2, %s17
      // Predicated region
      $region49: #{tpu_custom_call.1} parent=5 // pred_check
        %p457 = pneg %p456
      $region50: #{tpu_custom_call.1} parent=5 // pred_check_branch
        %459 = sbr.rel (%p457) target = $region52
      $region51: #{tpu_custom_call.1} parent=5 // pred_region
        %s460 = ssub.s32 %s17, 2
        // Predicated region
        $region53: #{tpu_custom_call.1} parent=51 // pred_check
          %p461 = pneg %p156
        $region54: #{tpu_custom_call.1} parent=51 // pred_check_branch
          %463 = sbr.rel (%p461) target = $region56
        $region55: #{tpu_custom_call.1} parent=51 // pred_region
          %s464 = sand.u32 %s141, 1
          %s465 = scalar_lea.sflag [#allocation4], %s464
          %s466 = sand.u32 %s141, 1
          %s467 = smul.addr %s466, 8
          %s468 = scalar_lea.vmem [#allocation5], %s467
          %469 = dma.done %s465, 128
        $region56: #{tpu_custom_call.1} parent=51 // pred_fallthru
          _
      $region52: #{tpu_custom_call.1} parent=5 // pred_fallthru
        _
    $region6: #{tpu_custom_call.1} parent=1 // loop_footer
      %s21 = sadd.s32 1, %s17
    $region7: #{tpu_custom_call.1} parent=1 // loop_footer_branch
      %16 = sbr.rel target = $region3
    $region8: #{tpu_custom_call.1} parent=1 // loop_exit
      _
    %470 = vsyncpa [#allocation3], 1
    %s471 = scalar_lea.sflag [#allocation3], 1
    %472 = vsyncpa %s471, 1
    %473 = vsyncpa [#allocation4], 1
    %s474 = scalar_lea.sflag [#allocation4], 1
    %475 = vsyncpa %s474, 1

</llo_original>
